<compile_context>
chip_gen: v6e
topology: v6e:2x2x1
jax: 0.10.0
libtpu: 0.0.40
codegen_flags: <defaults>
</compile_context>

<pallas_src>
import functools

import jax
import jax.numpy as jnp
from jax import lax
from jax.experimental import pallas as pl
from jax.experimental.pallas import tpu as pltpu


# ----------------------------------------------------------------------------
# helpers
# ----------------------------------------------------------------------------
def _softplus(x):
    # numerically stable softplus, written explicitly so it lowers everywhere
    return jnp.maximum(x, 0.0) + jnp.log1p(jnp.exp(-jnp.abs(x)))


def _pick_col_tile(total_cols):
    # biggest lane-dense tile (multiple of 128) that evenly divides the columns;
    # otherwise a single full-width tile (allowed: block dim == full array dim).
    for t in (2048, 1024, 512, 256, 128):
        if total_cols >= t and total_cols % t == 0:
            return t
    return total_cols


# ----------------------------------------------------------------------------
# Pass 1: fused GEMM + ReLU, materialize activations + per-tile BN partial sums
# ----------------------------------------------------------------------------
def _act_stats_kernel(apply_relu, a_ref, a2_ref, p1_ref, act_ref, sum_ref, ssq_ref):
    # a_ref: [Din, CT] (bf16), p1_ref: [2Do, Din] (bf16), a2_ref: [2Do, CT] (f32)
    pre = jnp.dot(p1_ref[...], a_ref[...],
                  preferred_element_type=jnp.float32)            # [2Do, CT] f32
    pre = pre + a2_ref[...]
    act = jnp.maximum(pre, 0.0) if apply_relu else pre
    act_ref[...] = act
    sum_ref[...] = jnp.sum(act, axis=1, keepdims=True)[None]      # [1, 2Do, 1]
    ssq_ref[...] = jnp.sum(act * act, axis=1, keepdims=True)[None]


def run_act_stats(A_cm, A2_cm, P1, apply_relu, col_tile):
    din, C = A_cm.shape
    do2 = P1.shape[0]
    T = C // col_tile
    kern = functools.partial(_act_stats_kernel, apply_relu)
    return pl.pallas_call(
        kern,
        out_shape=(jax.ShapeDtypeStruct((do2, C), jnp.float32),
                   jax.ShapeDtypeStruct((T, do2, 1), jnp.float32),
                   jax.ShapeDtypeStruct((T, do2, 1), jnp.float32)),
        grid_spec=pltpu.PrefetchScalarGridSpec(
            num_scalar_prefetch=0,
            grid=(T,),
            in_specs=[pl.BlockSpec((din, col_tile), lambda t: (0, t)),
                      pl.BlockSpec((do2, col_tile), lambda t: (0, t)),
                      pl.BlockSpec((do2, din), lambda t: (0, 0))],
            out_specs=(pl.BlockSpec((do2, col_tile), lambda t: (0, t)),
                       pl.BlockSpec((1, do2, 1), lambda t: (t, 0, 0)),
                       pl.BlockSpec((1, do2, 1), lambda t: (t, 0, 0)))),
        compiler_params=pltpu.CompilerParams(
            dimension_semantics=("parallel",)),
    )(A_cm, A2_cm, P1)


# ----------------------------------------------------------------------------
# Pass 2: folded BN scale/shift + softplus + closed-form reparameterized I_XZ
# ----------------------------------------------------------------------------
def _bn_reparam_kernel(do, act_ref, scale_ref, shift_ref, em_ref, e2_ref,
                       mean_ref, ixz_ref):
    bn = act_ref[...] * scale_ref[...] + shift_ref[...]           # [2Do, CT]
    mean_p = bn[:do, :]                                           # dist mean
    std = _softplus(bn[do:, :]) + 1e-10                           # dist std
    mean_ref[...] = mean_p

    em = em_ref[...]                                              # E_s[eps]
    e2 = e2_ref[...]                                              # E_s[eps^2]
    # mean_s[ -log std + 0.5*(Z^2 - eps^2) ], Z = mean + std*eps, closed in eps
    per_elem = (0.5 * (mean_p * mean_p
                       + 2.0 * mean_p * std * em
                       + (std * std - 1.0) * e2)
                - jnp.log(std))
    ixz_ref[...] = jnp.sum(per_elem, axis=0, keepdims=True)       # [1, CT]


def run_bn_reparam(act, scale, shift, eps_mean, eps_sq_mean, do, col_tile):
    do2, C = act.shape
    T = C // col_tile
    kern = functools.partial(_bn_reparam_kernel, do)
    return pl.pallas_call(
        kern,
        out_shape=(jax.ShapeDtypeStruct((do, C), jnp.float32),
                   jax.ShapeDtypeStruct((1, C), jnp.float32)),
        grid_spec=pltpu.PrefetchScalarGridSpec(
            num_scalar_prefetch=0,
            grid=(T,),
            in_specs=[pl.BlockSpec((do2, col_tile), lambda t: (0, t)),
                      pl.BlockSpec((do2, 1), lambda t: (0, 0)),
                      pl.BlockSpec((do2, 1), lambda t: (0, 0)),
                      pl.BlockSpec((do, col_tile), lambda t: (0, t)),
                      pl.BlockSpec((do, col_tile), lambda t: (0, t))],
            out_specs=(pl.BlockSpec((do, col_tile), lambda t: (0, t)),
                       pl.BlockSpec((1, col_tile), lambda t: (0, t)))),
        compiler_params=pltpu.CompilerParams(
            dimension_semantics=("parallel",)),
    )(act, scale, shift, eps_mean, eps_sq_mean)


# ----------------------------------------------------------------------------
# Parameters / BN state (matches Layer_EIB_1DPE.__init__)
# ----------------------------------------------------------------------------
def init_params(key, input_dim, output_dim):
    k1, k2 = jax.random.split(key)
    ini = (3.0 / output_dim / 2.0 / input_dim) ** 0.5

    def u(k, shape):
        return jax.random.uniform(k, shape, jnp.float32, minval=-ini, maxval=ini)

    return {
        "P1": u(k1, (output_dim * 2, input_dim)),
        "P2": u(k2, (output_dim * 2, input_dim)),
        "bn_gamma": jnp.ones((output_dim * 2,), jnp.float32),
        "bn_beta": jnp.zeros((output_dim * 2,), jnp.float32),
    }


def init_bn_state(output_dim):
    return {"running_mean": jnp.zeros((output_dim * 2,), jnp.float32),
            "running_var": jnp.ones((output_dim * 2,), jnp.float32)}


# ----------------------------------------------------------------------------
# Forward (mirrors Layer_EIB_1DPE.forward; BN buffers returned functionally)
# ----------------------------------------------------------------------------
def layer_eib_1dpe_forward(params, bn_state, A, permutation_size1, BATCH_SIZE,
                           sample_size, key, *, eps=None, is_BN=True,
                           is_transfer=True, training=True, momentum=0.1):
    B, Din, N = A.shape
    assert B == BATCH_SIZE and N == permutation_size1
    do2 = params["P1"].shape[0]
    Do = do2 // 2
    C = B * N
    col_tile = _pick_col_tile(C)

    # Channel-major, lane-dense slab: column index c = b*N + n.
    A_cm = jnp.transpose(A, (1, 0, 2)).reshape(Din, C)

    # A2 term precomputed in the wrapper (tiny XLA matmul), repeated across the
    # N columns of each batch so the kernel only does a lane add.
    A_mean = jnp.mean(A, axis=2)                                   # [B, Din]
    A2 = 0.1 * jnp.dot(params["P2"], A_mean.T,
                       precision=lax.Precision.HIGHEST)            # [2Do, B]
    A2_cm = jnp.repeat(A2, N, axis=1)                               # [2Do, C]

    # bf16 MXU operands, f32 accumulation and all post-matmul math.
    act, sums, ssqs = run_act_stats(A_cm.astype(jnp.bfloat16), A2_cm,
                                    params["P1"].astype(jnp.bfloat16),
                                    is_transfer, col_tile)

    if is_BN:
        if training:
            cnt = float(C)
            s = jnp.sum(sums, axis=0)[:, 0]                        # [2Do]
            ss = jnp.sum(ssqs, axis=0)[:, 0]
            mu = s / cnt
            var = jnp.maximum(ss / cnt - mu * mu, 0.0)   # biased (normalization)
            unb = var * (cnt / max(cnt - 1.0, 1.0))      # unbiased (running buf)
            new_bn_state = {
                "running_mean": (1.0 - momentum) * bn_state["running_mean"]
                                 + momentum * mu,
                "running_var": (1.0 - momentum) * bn_state["running_var"]
                                + momentum * unb,
            }
        else:
            mu = bn_state["running_mean"]
            var = bn_state["running_var"]
            new_bn_state = bn_state
        rsig = lax.rsqrt(var + 1e-5)
        scale = (params["bn_gamma"] * rsig)[:, None]               # [2Do, 1]
        shift = (params["bn_beta"] - mu * params["bn_gamma"] * rsig)[:, None]
    else:
        scale = jnp.ones((do2, 1), jnp.float32)
        shift = jnp.zeros((do2, 1), jnp.float32)
        new_bn_state = bn_state

    # Monte-Carlo noise drawn once in the wrapper; the kernel consumes only the
    # per-element sample means E[eps], E[eps^2] (closed-form quadratic).
    if eps is None:
        eps = jax.random.normal(key, (sample_size, Do, C), jnp.float32)
    eps_mean = jnp.mean(eps, axis=0)                               # [Do, C]
    eps_sq_mean = jnp.mean(eps * eps, axis=0)                      # [Do, C]

    mean_cm, ixz_cols = run_bn_reparam(act, scale.astype(jnp.float32),
                                       shift.astype(jnp.float32),
                                       eps_mean, eps_sq_mean, Do, col_tile)

    A_out = jnp.transpose(mean_cm.reshape(Do, B, N), (1, 0, 2))    # [B, Do, N]
    I_XZ = jnp.sum(ixz_cols.reshape(B, N), axis=1)                 # [B]
    return A_out, I_XZ, new_bn_state


# ----------------------------------------------------------------------------
# Pure-JAX reference (same eps draws -> full numerical check incl. I_XZ)
# ----------------------------------------------------------------------------
def reference_forward(params, A, eps):
    hi = lax.Precision.HIGHEST
    P1, P2 = params["P1"], params["P2"]
    B, Din, N = A.shape
    Do = P1.shape[0] // 2
    A1 = jnp.einsum("od,bdn->bon", P1, A, precision=hi)
    A2 = jnp.einsum("od,bd->bo", P2, jnp.mean(A, axis=-1), precision=hi)
    act = jnp.maximum(A1 + 0.1 * A2[:, :, None], 0.0)
    mu = jnp.mean(act, axis=(0, 2), keepdims=True)
    var = jnp.mean(act * act, axis=(0, 2), keepdims=True) - mu * mu
    bn = (act - mu) * lax.rsqrt(var + 1e-5)          # gamma=1, beta=0 at init
    mean_p = bn[:, :Do, :]
    std = jax.nn.softplus(bn[:, Do:, :]) + 1e-10
    S = eps.shape[0]
    eps_r = eps.reshape(S, Do, B, N).transpose(0, 2, 1, 3)         # [S,B,Do,N]
    z = mean_p[None] + std[None] * eps_r
    per = -jnp.log(std)[None] + 0.5 * (z * z - eps_r * eps_r)
    I_XZ = jnp.sum(jnp.mean(per, axis=0), axis=(1, 2))
    return mean_p, I_XZ


# ----------------------------------------------------------------------------
if __name__ == "__main__":
    B = 2            # BATCH_SIZE
    Din = 8          # input_dim
    Do = 8           # output_dim
    N = 16           # permutation_size1
    S = 4            # sample_size

    key = jax.random.PRNGKey(0)
    kp, ka, ke = jax.random.split(key, 3)

    params = init_params(kp, Din, Do)
    bn_state = init_bn_state(Do)
    A = jax.random.normal(ka, (B, Din, N), jnp.float32)
    eps = jax.random.normal(ke, (S, Do, B * N), jnp.float32)

    A_out, I_XZ, new_bn_state = layer_eib_1dpe_forward(
        params, bn_state, A, N, B, S, ke, eps=eps)
    A_out, I_XZ = jax.block_until_ready((A_out, I_XZ))

    # shape checks (mirror the PyTorch forward's return shapes)
    assert A_out.shape == (B, Do, N)
    assert I_XZ.shape == (B,)
    assert new_bn_state["running_mean"].shape == (2 * Do,)

    # numerical check vs. pure-JAX f32 reference using the same eps draws
    # (tolerances account for the bf16 MXU operands in the kernel path)
    A_out_ref, I_XZ_ref = reference_forward(params, A, eps)
    assert bool(jnp.allclose(A_out, A_out_ref, atol=3e-2, rtol=3e-2)), \
        float(jnp.max(jnp.abs(A_out - A_out_ref)))
    assert bool(jnp.allclose(I_XZ, I_XZ_ref, rtol=5e-2, atol=2e-1)), \
        (I_XZ, I_XZ_ref)
    assert bool(jnp.all(jnp.isfinite(I_XZ)))

    print("KERNEL_OK")
</pallas_src>

<mosaic_0001>
module attributes {stable_mosaic.version = 11 : i64} {
  func.func @_act_stats_kernel(%arg0: i32, %arg1: memref<8x32xbf16, #tpu.memory_space<vmem>>, %arg2: memref<16x32xf32, #tpu.memory_space<vmem>>, %arg3: memref<16x8xbf16, #tpu.memory_space<vmem>>, %arg4: memref<16x32xf32, #tpu.memory_space<vmem>>, %arg5: memref<1x16x1xf32, #tpu.memory_space<vmem>>, %arg6: memref<1x16x1xf32, #tpu.memory_space<vmem>>) attributes {dimension_semantics = [#tpu.dimension_semantics<parallel>], iteration_bounds = array<i64: 1>, scalar_prefetch = 0 : i64, scratch_operands = 0 : i64, tpu.core_type = #tpu.core_type<tc>, window_params = [{transform_indices = @transform_0, window_bounds = array<i64: 8, 32>}, {transform_indices = @transform_1, window_bounds = array<i64: 16, 32>}, {pipeline_mode = #tpu.pipeline_mode<synchronous>, transform_indices = @transform_2, window_bounds = array<i64: 16, 8>}, {transform_indices = @transform_3, window_bounds = array<i64: 16, 32>}, {transform_indices = @transform_4, window_bounds = array<i64: 1, 16, 1>}, {transform_indices = @transform_5, window_bounds = array<i64: 1, 16, 1>}]} {
    %c0 = arith.constant 0 : index
    %c0_0 = arith.constant 0 : index
    %0 = vector.load %arg3[%c0, %c0_0] : memref<16x8xbf16, #tpu.memory_space<vmem>>, vector<16x8xbf16>
    %c0_1 = arith.constant 0 : index
    %c0_2 = arith.constant 0 : index
    %1 = vector.load %arg1[%c0_1, %c0_2] : memref<8x32xbf16, #tpu.memory_space<vmem>>, vector<8x32xbf16>
    %cst = arith.constant dense<0.000000e+00> : vector<16x32xf32>
    %2 = tpu.matmul %0, %1, %cst {dimension_numbers = #tpu.dot_dimension_numbers<[1], [0], [0], [1], [0, 0, 1, 1], [], []>} : vector<16x8xbf16>, vector<8x32xbf16>, vector<16x32xf32> -> vector<16x32xf32>
    %c0_3 = arith.constant 0 : index
    %c0_4 = arith.constant 0 : index
    %3 = vector.load %arg2[%c0_3, %c0_4] : memref<16x32xf32, #tpu.memory_space<vmem>>, vector<16x32xf32>
    %4 = arith.addf %2, %3 : vector<16x32xf32>
    %cst_5 = arith.constant 0.000000e+00 : f32
    %5 = vector.broadcast %cst_5 : f32 to vector<16x32xf32>
    %6 = arith.maximumf %4, %5 : vector<16x32xf32>
    %c0_6 = arith.constant 0 : index
    %c0_7 = arith.constant 0 : index
    %7 = vector.load %arg4[%c0_6, %c0_7] : memref<16x32xf32, #tpu.memory_space<vmem>>, vector<16x32xf32>
    tpu.vector_store %arg4[%c0_6, %c0_7], %6 {strides = array<i32>} : memref<16x32xf32, #tpu.memory_space<vmem>>, vector<16x32xf32>,
    %cst_8 = arith.constant dense<0.000000e+00> : vector<16xf32>
    %8 = vector.multi_reduction <add>, %6, %cst_8 [1] : vector<16x32xf32> to vector<16xf32>
    %9 = vector.shape_cast %8 : vector<16xf32> to vector<16x1xf32>
    %10 = vector.shape_cast %9 : vector<16x1xf32> to vector<1x16x1xf32>
    %c0_9 = arith.constant 0 : index
    %c0_10 = arith.constant 0 : index
    %c0_11 = arith.constant 0 : index
    %11 = vector.load %arg5[%c0_9, %c0_10, %c0_11] : memref<1x16x1xf32, #tpu.memory_space<vmem>>, vector<1x16x1xf32>
    tpu.vector_store %arg5[%c0_9, %c0_10, %c0_11], %10 {strides = array<i32>} : memref<1x16x1xf32, #tpu.memory_space<vmem>>, vector<1x16x1xf32>,
    %12 = arith.mulf %6, %6 : vector<16x32xf32>
    %cst_12 = arith.constant dense<0.000000e+00> : vector<16xf32>
    %13 = vector.multi_reduction <add>, %12, %cst_12 [1] : vector<16x32xf32> to vector<16xf32>
    %14 = vector.shape_cast %13 : vector<16xf32> to vector<16x1xf32>
    %15 = vector.shape_cast %14 : vector<16x1xf32> to vector<1x16x1xf32>
    %c0_13 = arith.constant 0 : index
    %c0_14 = arith.constant 0 : index
    %c0_15 = arith.constant 0 : index
    %16 = vector.load %arg6[%c0_13, %c0_14, %c0_15] : memref<1x16x1xf32, #tpu.memory_space<vmem>>, vector<1x16x1xf32>
    tpu.vector_store %arg6[%c0_13, %c0_14, %c0_15], %15 {strides = array<i32>} : memref<1x16x1xf32, #tpu.memory_space<vmem>>, vector<1x16x1xf32>,
    return
  }
  func.func @transform_0(%arg0: i32) -> (i32, i32) {
    %c0_i32 = arith.constant 0 : i32
    %c0_i32_0 = arith.constant 0 : i32
    return %c0_i32, %arg0 : i32, i32
  }
  func.func @transform_1(%arg0: i32) -> (i32, i32) {
    %c0_i32 = arith.constant 0 : i32
    %c0_i32_0 = arith.constant 0 : i32
    return %c0_i32, %arg0 : i32, i32
  }
  func.func @transform_2(%arg0: i32) -> (i32, i32) {
    %c0_i32 = arith.constant 0 : i32
    %c0_i32_0 = arith.constant 0 : i32
    %c0_i32_1 = arith.constant 0 : i32
    return %c0_i32, %c0_i32_0 : i32, i32
  }
  func.func @transform_3(%arg0: i32) -> (i32, i32) {
    %c0_i32 = arith.constant 0 : i32
    %c0_i32_0 = arith.constant 0 : i32
    return %c0_i32, %arg0 : i32, i32
  }
  func.func @transform_4(%arg0: i32) -> (i32, i32, i32) {
    %c0_i32 = arith.constant 0 : i32
    %c0_i32_0 = arith.constant 0 : i32
    %c0_i32_1 = arith.constant 0 : i32
    return %arg0, %c0_i32, %c0_i32_0 : i32, i32, i32
  }
  func.func @transform_5(%arg0: i32) -> (i32, i32, i32) {
    %c0_i32 = arith.constant 0 : i32
    %c0_i32_0 = arith.constant 0 : i32
    %c0_i32_1 = arith.constant 0 : i32
    return %arg0, %c0_i32, %c0_i32_0 : i32, i32, i32
  }
}

</mosaic_0001>

<llo_original>
// kernel: tpu_custom_call.1
$region0: #{tpu_custom_call.1}
  #allocation0 [shape = 'u32[]', space=smem, size = 0x4, offset = 0x4, fixed_abs, tag = 'smem constant byte address 0x4 - core index']
  #allocation1 [shape = 'u32[144,128]{1,0:T(1,128)}', space=vmem, size = 0x12000, scoped, tag = 'internal scratch']
  %s0 = inlined_call_operand.vmem [shape: bf16[8,32], index: 0, kind: input, shape index: {}]
  %s1 = inlined_call_operand.hbm [shape: f32[16,32], index: 1, kind: input, shape index: {}]
  %s2 = inlined_call_operand.vmem [shape: bf16[16,8], index: 2, kind: input, shape index: {}]
  %s3 = inlined_call_operand.hbm [shape: f32[16,32], index: 3, kind: output, shape index: {0}]
  %s4 = inlined_call_operand.vmem [shape: f32[1,16,1], index: 4, kind: output, shape index: {1}]
  %s5 = inlined_call_operand.vmem [shape: f32[1,16,1], index: 5, kind: output, shape index: {2}]
  %6 = xla_tuple %s3, %s4, %s5
  %s7 = sld [smem:[#allocation0]]
  $region42: #{tpu_custom_call.1} parent=0
    _
  %s9 = ssub.s32 1, %s7
  %s10 = scalar_select 0, %s9, %s7
  $region1: #{tpu_custom_call.1} parent=0
    #allocation2 [shape = 'u8[8192]{0}', space=vmem, size = 0x2000, scoped, tag = 'input window, operand 1, single buffered']
    #allocation3 [shape = 's32[1]{0}', space=sflag, size = 0x4, scoped, tag = 'scoped memory for tpu_custom_call.1']
    #allocation4 [shape = 's32[1]{0}', space=sflag, size = 0x4, scoped, tag = 'scoped memory for tpu_custom_call.1']
    #allocation5 [shape = 'u8[8192]{0}', space=vmem, size = 0x2000, scoped, tag = 'output window, operand 0, single buffered']
    %11 = vsyncpa [#allocation3], 0
    %12 = vsyncpa [#allocation4], 0
    // Predicated region
    $region2: #{tpu_custom_call.1} parent=1 // pred_check
      _
    $region3: #{tpu_custom_call.1} parent=1 // pred_check_branch
      %14 = sbr.rel (0) target = $region5
    $region4: #{tpu_custom_call.1} parent=1 // pred_region
      _
    $region5: #{tpu_custom_call.1} parent=1 // pred_fallthru
      _
    // Predicated region
    $region6: #{tpu_custom_call.1} parent=1 // pred_check
      _
    $region7: #{tpu_custom_call.1} parent=1 // pred_check_branch
      %16 = sbr.rel (0) target = $region9
    $region8: #{tpu_custom_call.1} parent=1 // pred_region
      %s18 = ssub.s32 256, 256
      %19 = vsyncadd [#allocation3], %s18
      %s20 = sshll.u32 [#allocation2], 4
      %s21 = int_to_ptr.vmem [resolvable:$true] %s20
      %26 = dma.hbm_to_vmem [thread:$0]  %s1, 256, %s21, [#allocation3], 128, 128, 8
    $region9: #{tpu_custom_call.1} parent=1 // pred_fallthru
      _
    // Predicated region
    $region10: #{tpu_custom_call.1} parent=1 // pred_check
      _
    $region11: #{tpu_custom_call.1} parent=1 // pred_check_branch
      %28 = sbr.rel (0) target = $region13
    $region12: #{tpu_custom_call.1} parent=1 // pred_region
      _
    $region13: #{tpu_custom_call.1} parent=1 // pred_fallthru
      _
    // Predicated region
    $region14: #{tpu_custom_call.1} parent=1 // pred_check
      _
    $region15: #{tpu_custom_call.1} parent=1 // pred_check_branch
      %30 = sbr.rel (0) target = $region17
    $region16: #{tpu_custom_call.1} parent=1 // pred_region
      %31 = dma.done [#allocation3], 256
    $region17: #{tpu_custom_call.1} parent=1 // pred_fallthru
      _
    %v33 = vld [vmem:[%s2] sm:$0xf]
    %v34 = vld [vmem:[%s2 + $0x4] sm:$0xf]
    %v35 = vld [vmem:[%s0] sm:$0xf]
    %v36 = vld [vmem:[#allocation2] sm:$0xff]
    %v37 = vld [vmem:[#allocation2 + $0x8] sm:$0xff]
    %v40 = vunpack.c.l.b16 %v33
    %v41 = vunpack.c.l.b16 %v34
    %v42 = vpack.c.b16 %v41, %v40
    %vm43 = vcmask 64512
    %v45 = vsel %vm43, %v42, 0
    %vm47 = vcmask 1043456
    %v49 = vsel %vm47, %v35, 0
    %51 = vmatprep.subr.bf16.mxu0 0
    %52 = vmatpush1.bf16.msra.mxu0 0
    %53 = vmatprep.subr.bf16.mxu0 0
    %54 = vmatpush1.bf16.msra.mxu0 0
    %55 = vmatprep.subr.bf16.mxu0 0
    %56 = vmatpush1.bf16.msra.mxu0 0
    %57 = vmatprep.subr.bf16.mxu0 0
    %58 = vmatpush1.bf16.msra.mxu0 0
    %59 = vmatprep.subr.bf16.mxu0 0
    %60 = vmatpush1.bf16.msra.mxu0 0
    %61 = vmatprep.subr.bf16.mxu0 0
    %62 = vmatpush1.bf16.msra.mxu0 0
    %63 = vmatprep.subr.bf16.mxu0 0
    %64 = vmatpush1.bf16.msra.mxu0 0
    %65 = vmatprep.subr.bf16.mxu0 0
    %66 = vmatpush1.bf16.msra.mxu0 %v49
    %67 = vmatprep.subr.bf16.mxu0 0
    %68 = vmatpush2.bf16.msra.mxu0 0
    %69 = vmatprep.subr.bf16.mxu0 0
    %70 = vmatpush2.bf16.msra.mxu0 0
    %71 = vmatprep.subr.bf16.mxu0 0
    %72 = vmatpush2.bf16.msra.mxu0 0
    %73 = vmatprep.subr.bf16.mxu0 0
    %74 = vmatpush2.bf16.msra.mxu0 0
    %75 = vmatprep.subr.bf16.mxu0 0
    %76 = vmatpush2.bf16.msra.mxu0 0
    %77 = vmatprep.subr.bf16.mxu0 0
    %78 = vmatpush2.bf16.msra.mxu0 0
    %79 = vmatprep.subr.bf16.mxu0 0
    %80 = vmatpush2.bf16.msra.mxu0 0
    %81 = vmatprep.subr.bf16.mxu0 0
    %82 = vmatpush2.bf16.msra.mxu0 0
    %83 = vmatprep.mubr.bf16.mxu0 0
    %84 = vmatmul.mubr.bf16.gmra.mxu0 %v45
    %v85 = vpop.f32.mrf.mxu0
    %v86 = vadd.f32 %v36, %v85
    %v87 = vpop.f32.mrf.mxu0
    %v88 = vpop.f32.mrf.mxu0
    %v89 = vadd.f32 %v37, %v88
    %v90 = vpop.f32.mrf.mxu0
    %91 = vdwg.mxu0
    %v92 = vmax.f32 %v86, 0.0
    %v93 = vmax.f32 %v89, 0.0
    %vm94 = vcmask 261120
    %95 = vst.msk [vmem:[#allocation5] sm:$0xff] %vm94, %v92
    %96 = vst.msk [vmem:[#allocation5 + $0x8] sm:$0xff] %vm94, %v93
    %v97 = vsel %vm94, %v92, 0.0
    %98 = vadd.xlane.f32.xlu0 %v97
    %v99 = vpop.xlane.xlu0 %98
    %v100 = vsel %vm94, %v93, 0.0
    %101 = vadd.xlane.f32.xlu0 %v100
    %v102 = vpop.xlane.xlu0 %101
    %vm103 = vcmask 7168
    %104 = vst.msk [vmem:[%s4] sm:$0xff] %vm103, %v99
    %105 = vst.msk [vmem:[%s4 + $0x8] sm:$0xff] %vm103, %v102
    %v106 = vmul.f32 %v92, %v92
    %v107 = vmul.f32 %v93, %v93
    %v108 = vsel %vm94, %v106, 0.0
    %109 = vadd.xlane.f32.xlu0 %v108
    %v110 = vpop.xlane.xlu0 %109
    %v111 = vsel %vm94, %v107, 0.0
    %112 = vadd.xlane.f32.xlu0 %v111
    %v113 = vpop.xlane.xlu0 %112
    %114 = vst.msk [vmem:[%s5] sm:$0xff] %vm103, %v110
    %115 = vst.msk [vmem:[%s5 + $0x8] sm:$0xff] %vm103, %v113
    // Predicated region
    $region18: #{tpu_custom_call.1} parent=1 // pred_check
      _
    $region19: #{tpu_custom_call.1} parent=1 // pred_check_branch
      %117 = sbr.rel (0) target = $region21
    $region20: #{tpu_custom_call.1} parent=1 // pred_region
      %s119 = ssub.s32 256, 256
      %120 = vsyncadd [#allocation4], %s119
      %s121 = sshll.u32 [#allocation5], 4
      %s122 = int_to_ptr.vmem [resolvable:$true] %s121
      %127 = dma.vmem_to_hbm [thread:$0]  %s122, 256, %s3, [#allocation4], 128, 128, 8
    $region21: #{tpu_custom_call.1} parent=1 // pred_fallthru
      _
    // Predicated region
    $region22: #{tpu_custom_call.1} parent=1 // pred_check
      _
    $region23: #{tpu_custom_call.1} parent=1 // pred_check_branch
      %129 = sbr.rel (0) target = $region25
    $region24: #{tpu_custom_call.1} parent=1 // pred_region
      _
    $region25: #{tpu_custom_call.1} parent=1 // pred_fallthru
      _
    // Predicated region
    $region26: #{tpu_custom_call.1} parent=1 // pred_check
      _
    $region27: #{tpu_custom_call.1} parent=1 // pred_check_branch
      %131 = sbr.rel (0) target = $region29
    $region28: #{tpu_custom_call.1} parent=1 // pred_region
      _
    $region29: #{tpu_custom_call.1} parent=1 // pred_fallthru
      _
    // Predicated region
    $region30: #{tpu_custom_call.1} parent=1 // pred_check
      _
    $region31: #{tpu_custom_call.1} parent=1 // pred_check_branch
      %133 = sbr.rel (0) target = $region33
    $region32: #{tpu_custom_call.1} parent=1 // pred_region
      %134 = dma.done [#allocation4], 256
    $region33: #{tpu_custom_call.1} parent=1 // pred_fallthru
      _
    // Predicated region
    $region34: #{tpu_custom_call.1} parent=1 // pred_check
      _
    $region35: #{tpu_custom_call.1} parent=1 // pred_check_branch
      %136 = sbr.rel (0) target = $region37
    $region36: #{tpu_custom_call.1} parent=1 // pred_region
      _
    $region37: #{tpu_custom_call.1} parent=1 // pred_fallthru
      _
    // Predicated region
    $region38: #{tpu_custom_call.1} parent=1 // pred_check
      _
    $region39: #{tpu_custom_call.1} parent=1 // pred_check_branch
      %138 = sbr.rel (0) target = $region41
    $region40: #{tpu_custom_call.1} parent=1 // pred_region
      _
    $region41: #{tpu_custom_call.1} parent=1 // pred_fallthru
      _
    %139 = vsyncpa [#allocation3], 1
    %140 = vsyncpa [#allocation4], 1

</llo_original>
